<compile_context>
chip_gen: v7x
topology: tpu7x:2x2x1
jax: 0.10.0
libtpu: 0.0.40
codegen_flags: <defaults>
</compile_context>

<pallas_src>
import math
from functools import partial

import jax
import jax.numpy as jnp
import numpy as np
from jax import lax
from jax.experimental import pallas as pl
from jax.experimental.pallas import tpu as pltpu


# ----------------------------------------------------------------------------
# Shared helper: per-row count of a boolean predicate, lane reduction on MXU.
# pred: (R, C) bool -> (R, 1) int32.  Exact: 0/1 bf16 products, f32 accumulate
# (exact up to 2^24 >= C), then convert to int32.
# ----------------------------------------------------------------------------
def _count_rows(pred, ones_bf16):
    pf = jnp.where(pred, jnp.bfloat16(1.0), jnp.bfloat16(0.0))
    c = jnp.dot(pf, ones_bf16, preferred_element_type=jnp.float32)  # (R, 128)
    return c[:, 0:1].astype(jnp.int32)                              # (R, 1)


def _float_key(x):
    """Order-preserving int32 key: a < b  <=>  key(a) < key(b) (no NaN).
    +0.0 and -0.0 are mapped to the same key so float-equality ties are kept."""
    bits = pltpu.bitcast(x, jnp.int32)
    key = jnp.where(bits < 0, bits ^ jnp.int32(0x7FFFFFFF), bits)
    return jnp.where(x == 0.0, jnp.int32(0), key)


# ----------------------------------------------------------------------------
# Phase 1a: per-row top-k mask via iterative argmax (cheap for small k),
# then fused  x*mask ; x[x==0] = -inf.
# ----------------------------------------------------------------------------
def _row_topk_iter_kernel(x_ref, y_ref, *, k_per_layer):
    x = x_ref[...]                                   # (TB, C) float32
    TB, C = x.shape
    neg_inf = jnp.float32(-jnp.inf)
    col = lax.broadcasted_iota(jnp.int32, (TB, C), 1)
    sentinel = jnp.int32(C)

    work = x
    mask = jnp.zeros((TB, C), jnp.bool_)
    # Fully unrolled (small static trip count by construction of the wrapper).
    # The `& ~mask` guard is required when a row runs out of finite values.
    for _ in range(k_per_layer):
        m = jnp.max(work, axis=1, keepdims=True)                    # (TB, 1)
        cand = jnp.where((work == m) & jnp.logical_not(mask), col, sentinel)
        first = jnp.min(cand, axis=1, keepdims=True)                # lowest idx
        sel = col == first
        mask = mask | sel
        work = jnp.where(sel, neg_inf, work)

    y_ref[...] = jnp.where(mask & (x != 0.0), x, neg_inf)


# ----------------------------------------------------------------------------
# Phase 1b: per-row top-k mask via int32-key bisection (k-independent cost),
# then fused  x*mask ; x[x==0] = -inf.
# ----------------------------------------------------------------------------
def _row_topk_bisect_kernel(x_ref, y_ref, *, k_per_layer, log2_c):
    x = x_ref[...]                                   # (TB, C) float32
    TB, C = x.shape
    neg_inf = jnp.float32(-jnp.inf)
    col = lax.broadcasted_iota(jnp.int32, (TB, C), 1)
    ones_bf16 = jnp.ones((C, 128), jnp.bfloat16)
    one = jnp.int32(1)

    key = _float_key(x)
    kk = jnp.int32(k_per_layer)

    # --- per-row bisection for the k-th largest key (threshold) ------------
    lo = jnp.full((TB, 1), jnp.iinfo(jnp.int32).min, jnp.int32)
    hi = jnp.full((TB, 1), jnp.iinfo(jnp.int32).max, jnp.int32)
    for _ in range(32):
        # ceil((lo+hi)/2) without int32 overflow
        mid = (lo >> one) + (hi >> one) + ((lo | hi) & one)
        cnt = _count_rows(key >= mid, ones_bf16)                    # (TB, 1)
        take = cnt >= kk
        lo = jnp.where(take, mid, lo)
        hi = jnp.where(take, hi, mid - one)
    thr = lo                                         # (TB, 1) per-row threshold

    gt = key > thr
    eq = key == thr
    r = kk - _count_rows(gt, ones_bf16)              # ties to keep per row, >=1

    # --- per-row bisection for the r-th lowest-index tie column ------------
    lo2 = jnp.zeros((TB, 1), jnp.int32)
    hi2 = jnp.full((TB, 1), C - 1, jnp.int32)
    for _ in range(log2_c):
        mid2 = (lo2 + hi2) >> one
        cnt2 = _count_rows(eq & (col <= mid2), ones_bf16)
        take2 = cnt2 >= r
        lo2 = jnp.where(take2, lo2, mid2 + one)
        hi2 = jnp.where(take2, mid2, hi2)

    mask = gt | (eq & (col <= hi2))
    y_ref[...] = jnp.where(mask & (x != 0.0), x, neg_inf)


# ----------------------------------------------------------------------------
# Phase 2: global top-k over the flattened tensor via threshold bisection with
# MXU-offloaded counting and row-first tie narrowing, then fused
# nan_to_num(neginf=0) * mask.
# ----------------------------------------------------------------------------
def _global_topk_kernel(y_ref, o_ref, *, k_batch, log2_b, log2_c):
    y = y_ref[...]                                   # (B, C) float32
    B, C = y.shape
    neg_inf = jnp.float32(-jnp.inf)
    col = lax.broadcasted_iota(jnp.int32, (B, C), 1)
    row = lax.broadcasted_iota(jnp.int32, (B, C), 0)
    row_v = lax.broadcasted_iota(jnp.int32, (B, 1), 0)
    ones_bf16 = jnp.ones((C, 128), jnp.bfloat16)
    one = jnp.int32(1)

    # y contains no NaN and no +/-0 (zeros became -inf in phase 1).
    key = _float_key(y)

    def count_all(pred):                              # (B,C) bool -> (1,1) i32
        return jnp.sum(_count_rows(pred, ones_bf16), axis=0, keepdims=True)

    kb = jnp.full((1, 1), k_batch, jnp.int32)

    # --- bisection for the k_batch-th largest key (threshold), 32 steps ----
    lo = jnp.full((1, 1), jnp.iinfo(jnp.int32).min, jnp.int32)
    hi = jnp.full((1, 1), jnp.iinfo(jnp.int32).max, jnp.int32)
    for _ in range(32):
        mid = (lo >> one) + (hi >> one) + ((lo | hi) & one)
        cnt = count_all(key >= mid)
        take = cnt >= kb
        lo = jnp.where(take, mid, lo)
        hi = jnp.where(take, hi, mid - one)
    thr = lo                                          # (1,1) threshold key

    gt = key > thr
    eq = key == thr
    n_gt = count_all(gt)
    r = kb - n_gt                                     # ties to keep (>= 1)

    # --- row-first tie narrowing (lowest flat index, torch.topk parity) ----
    per_row = _count_rows(eq, ones_bf16)              # (B, 1) ties per row
    # smallest row rr whose inclusive tie prefix reaches r (tiny (B,1) work)
    lo_r = jnp.zeros((1, 1), jnp.int32)
    hi_r = jnp.full((1, 1), B - 1, jnp.int32)
    for _ in range(log2_b):
        mid_r = (lo_r + hi_r) >> one
        cnt_r = jnp.sum(jnp.where(row_v <= mid_r, per_row, 0),
                        axis=0, keepdims=True)
        take_r = cnt_r >= r
        lo_r = jnp.where(take_r, lo_r, mid_r + one)
        hi_r = jnp.where(take_r, mid_r, hi_r)
    rr = hi_r                                         # (1,1) cut row
    before = jnp.sum(jnp.where(row_v < rr, per_row, 0), axis=0, keepdims=True)
    r_in = r - before                                 # ties needed from row rr

    # extract row rr's tie pattern (one sublane reduction), then (1,C) bisection
    eq_rr = jnp.sum(jnp.where(row == rr, eq.astype(jnp.int32), 0),
                    axis=0, keepdims=True)            # (1, C) of 0/1
    col1 = lax.broadcasted_iota(jnp.int32, (1, C), 1)
    lo_c = jnp.zeros((1, 1), jnp.int32)
    hi_c = jnp.full((1, 1), C - 1, jnp.int32)
    for _ in range(log2_c):
        mid_c = (lo_c + hi_c) >> one
        cnt_c = jnp.sum(jnp.where(col1 <= mid_c, eq_rr, 0), keepdims=True)
        take_c = cnt_c >= r_in
        lo_c = jnp.where(take_c, lo_c, mid_c + one)
        hi_c = jnp.where(take_c, mid_c, hi_c)
    cc = hi_c                                         # (1,1) cut column in rr

    g_mask = gt | (eq & (row < rr)) | (eq & (row == rr) & (col <= cc))

    # Fused: x = nan_to_num(x, neginf=0) ; x = x * mask
    o_ref[...] = jnp.where(g_mask & (y != neg_inf), y, jnp.float32(0.0))


# ----------------------------------------------------------------------------
# Wrapper
# ----------------------------------------------------------------------------
def _pick_tb(B, C_pad, budget_bytes=32 << 20):
    """Largest row tile (multiple of 8 dividing B, or full B) whose estimated
    resident VMEM (~10 f32 (TB, C_pad) arrays: double-buffered I/O + temps)
    fits the budget.  Bigger tiles amortize the ~0.35us/step overhead and the
    serialized reduction chain, and stay safe on v7x's 64 MiB VMEM."""
    per_row = 10 * C_pad * 4
    cap = max(budget_bytes // per_row, 1)
    if B <= cap:
        return B
    tb, t = 0, 8
    limit = min(cap, B)
    while t <= limit:
        if B % t == 0:
            tb = t
        t += 8
    return tb if tb > 0 else B


def sparse_mlp(x, k, k_percent):
    x = jnp.asarray(x, jnp.float32)
    assert x.ndim == 2
    B, C = x.shape
    k_per_layer = math.ceil(k * C)
    k_batch = math.ceil(k_percent * B * k_per_layer)
    assert 1 <= k_per_layer <= C and 1 <= k_batch <= B * C

    # Lane-dense feature dim: pad to a multiple of 128 with -inf.  Padded
    # columns can never enter the per-row top-k (the original C finite values
    # always rank above them) and any padded entry that ties at a -inf global
    # threshold maps to 0 and is sliced off, so semantics are unchanged.
    C_pad = ((C + 127) // 128) * 128
    if C_pad != C:
        x = jnp.pad(x, ((0, 0), (0, C_pad - C)), constant_values=-jnp.inf)

    log2_c = int(math.ceil(math.log2(C_pad))) if C_pad > 1 else 0
    log2_b = int(math.ceil(math.log2(B))) if B > 1 else 0

    TB = _pick_tb(B, C_pad)

    # Cost model: iterative path ~ 2*k_per_layer reductions/row vs. bisection
    # ~ (32 + log2(C)) MXU counts/row, independent of k.
    use_bisect = (2 * k_per_layer) > (32 + log2_c)
    if use_bisect:
        phase1 = partial(_row_topk_bisect_kernel,
                         k_per_layer=k_per_layer, log2_c=log2_c)
    else:
        phase1 = partial(_row_topk_iter_kernel, k_per_layer=k_per_layer)

    vmem_limit = 48 * 1024 * 1024   # above v5e/v6e/v7x scoped defaults, < physical

    # Phase 1: independent per row -> parallel grid (2 TCs on v7x, pipelined DMA).
    y = pl.pallas_call(
        phase1,
        out_shape=jax.ShapeDtypeStruct((B, C_pad), jnp.float32),
        grid=(B // TB,),
        in_specs=[pl.BlockSpec((TB, C_pad), lambda i: (i, 0))],
        out_specs=pl.BlockSpec((TB, C_pad), lambda i: (i, 0)),
        compiler_params=pltpu.CompilerParams(
            dimension_semantics=("parallel",),
            vmem_limit_bytes=vmem_limit),
    )(x)

    # Phase 2: global selection over the whole tensor -> single block.
    out = pl.pallas_call(
        partial(_global_topk_kernel, k_batch=k_batch,
                log2_b=log2_b, log2_c=log2_c),
        out_shape=jax.ShapeDtypeStruct((B, C_pad), jnp.float32),
        grid=(1,),
        in_specs=[pl.BlockSpec((B, C_pad), lambda i: (0, 0))],
        out_specs=pl.BlockSpec((B, C_pad), lambda i: (0, 0)),
        compiler_params=pltpu.CompilerParams(
            dimension_semantics=("arbitrary",),
            vmem_limit_bytes=vmem_limit),
    )(y)

    return out[:, :C] if C_pad != C else out


def sparse_mlp_reference(x, k, k_percent):
    """Pure-JAX reference mirroring the PyTorch forward."""
    B, C = x.shape
    k_per_layer = math.ceil(k * C)
    k_batch = math.ceil(k_percent * B * k_per_layer)
    _, idx = lax.top_k(x, k_per_layer)
    rows = jnp.broadcast_to(jnp.arange(B)[:, None], (B, k_per_layer))
    row_mask = jnp.zeros((B, C), bool).at[rows.reshape(-1), idx.reshape(-1)].set(True)
    y = x * row_mask
    y = jnp.where(y == 0.0, -jnp.inf, y)
    _, gidx = lax.top_k(y.reshape(-1), k_batch)
    g_mask = jnp.zeros((B * C,), bool).at[gidx].set(True).reshape(B, C)
    z = jnp.where(jnp.isneginf(y), 0.0, y)
    return z * g_mask


if __name__ == "__main__":
    key = jax.random.PRNGKey(0)
    configs = [
        ((8, 128), 0.1, 0.5),    # small k  -> iterative per-row path
        ((16, 256), 0.3, 0.5),   # larger k -> per-row bisection path
    ]
    for (B, C), k, kp in configs:
        key, sub = jax.random.split(key)
        x = jax.random.normal(sub, (B, C), dtype=jnp.float32)
        out = jax.block_until_ready(sparse_mlp(x, k, kp))
        ref = jax.block_until_ready(sparse_mlp_reference(x, k, kp))
        np.testing.assert_allclose(np.asarray(out), np.asarray(ref),
                                   rtol=0.0, atol=0.0)
    print("KERNEL_OK")
</pallas_src>

<mosaic_0001>
module attributes {stable_mosaic.version = 11 : i64} {
  func.func @_row_topk_iter_kernel(%arg0: i32, %arg1: memref<8x128xf32, #tpu.memory_space<vmem>>, %arg2: memref<8x128xf32, #tpu.memory_space<vmem>>) attributes {dimension_semantics = [#tpu.dimension_semantics<parallel>], iteration_bounds = array<i64: 1>, scalar_prefetch = 0 : i64, scratch_operands = 0 : i64, tpu.core_type = #tpu.core_type<tc>, window_params = [{transform_indices = @transform_0, window_bounds = array<i64: 8, 128>}, {transform_indices = @transform_1, window_bounds = array<i64: 8, 128>}]} {
    %c0 = arith.constant 0 : index
    %c0_0 = arith.constant 0 : index
    %0 = vector.load %arg1[%c0, %c0_0] : memref<8x128xf32, #tpu.memory_space<vmem>>, vector<8x128xf32>
    %1 = tpu.iota {dimensions = array<i32: 1>} : vector<8x128xi32>
    %false = arith.constant false
    %2 = vector.broadcast %false : i1 to vector<8x128xi1>
    %cst = arith.constant dense<0xFF800000> : vector<8xf32>
    %3 = vector.multi_reduction <maximumf>, %0, %cst [1] : vector<8x128xf32> to vector<8xf32>
    %4 = vector.shape_cast %3 : vector<8xf32> to vector<8x1xf32>
    %5 = vector.broadcast %4 : vector<8x1xf32> to vector<8x128xf32>
    %6 = arith.cmpf oeq, %0, %5 : vector<8x128xf32>
    %cst_1 = arith.constant dense<true> : vector<8x128xi1>
    %7 = arith.xori %2, %cst_1 : vector<8x128xi1>
    %8 = arith.andi %6, %7 : vector<8x128xi1>
    %c128_i32 = arith.constant 128 : i32
    %9 = vector.broadcast %c128_i32 : i32 to vector<8x128xi32>
    %10 = arith.select %8, %1, %9 : vector<8x128xi1>, vector<8x128xi32>
    %cst_2 = arith.constant dense<2147483647> : vector<8xi32>
    %11 = vector.multi_reduction <minsi>, %10, %cst_2 [1] : vector<8x128xi32> to vector<8xi32>
    %12 = vector.shape_cast %11 : vector<8xi32> to vector<8x1xi32>
    %13 = vector.broadcast %12 : vector<8x1xi32> to vector<8x128xi32>
    %14 = arith.cmpi eq, %1, %13 : vector<8x128xi32>
    %15 = arith.ori %2, %14 : vector<8x128xi1>
    %cst_3 = arith.constant 0xFF800000 : f32
    %16 = vector.broadcast %cst_3 : f32 to vector<8x128xf32>
    %17 = arith.select %14, %16, %0 : vector<8x128xi1>, vector<8x128xf32>
    %cst_4 = arith.constant dense<0xFF800000> : vector<8xf32>
    %18 = vector.multi_reduction <maximumf>, %17, %cst_4 [1] : vector<8x128xf32> to vector<8xf32>
    %19 = vector.shape_cast %18 : vector<8xf32> to vector<8x1xf32>
    %20 = vector.broadcast %19 : vector<8x1xf32> to vector<8x128xf32>
    %21 = arith.cmpf oeq, %17, %20 : vector<8x128xf32>
    %cst_5 = arith.constant dense<true> : vector<8x128xi1>
    %22 = arith.xori %15, %cst_5 : vector<8x128xi1>
    %23 = arith.andi %21, %22 : vector<8x128xi1>
    %c128_i32_6 = arith.constant 128 : i32
    %24 = vector.broadcast %c128_i32_6 : i32 to vector<8x128xi32>
    %25 = arith.select %23, %1, %24 : vector<8x128xi1>, vector<8x128xi32>
    %cst_7 = arith.constant dense<2147483647> : vector<8xi32>
    %26 = vector.multi_reduction <minsi>, %25, %cst_7 [1] : vector<8x128xi32> to vector<8xi32>
    %27 = vector.shape_cast %26 : vector<8xi32> to vector<8x1xi32>
    %28 = vector.broadcast %27 : vector<8x1xi32> to vector<8x128xi32>
    %29 = arith.cmpi eq, %1, %28 : vector<8x128xi32>
    %30 = arith.ori %15, %29 : vector<8x128xi1>
    %cst_8 = arith.constant 0xFF800000 : f32
    %31 = vector.broadcast %cst_8 : f32 to vector<8x128xf32>
    %32 = arith.select %29, %31, %17 : vector<8x128xi1>, vector<8x128xf32>
    %cst_9 = arith.constant dense<0xFF800000> : vector<8xf32>
    %33 = vector.multi_reduction <maximumf>, %32, %cst_9 [1] : vector<8x128xf32> to vector<8xf32>
    %34 = vector.shape_cast %33 : vector<8xf32> to vector<8x1xf32>
    %35 = vector.broadcast %34 : vector<8x1xf32> to vector<8x128xf32>
    %36 = arith.cmpf oeq, %32, %35 : vector<8x128xf32>
    %cst_10 = arith.constant dense<true> : vector<8x128xi1>
    %37 = arith.xori %30, %cst_10 : vector<8x128xi1>
    %38 = arith.andi %36, %37 : vector<8x128xi1>
    %c128_i32_11 = arith.constant 128 : i32
    %39 = vector.broadcast %c128_i32_11 : i32 to vector<8x128xi32>
    %40 = arith.select %38, %1, %39 : vector<8x128xi1>, vector<8x128xi32>
    %cst_12 = arith.constant dense<2147483647> : vector<8xi32>
    %41 = vector.multi_reduction <minsi>, %40, %cst_12 [1] : vector<8x128xi32> to vector<8xi32>
    %42 = vector.shape_cast %41 : vector<8xi32> to vector<8x1xi32>
    %43 = vector.broadcast %42 : vector<8x1xi32> to vector<8x128xi32>
    %44 = arith.cmpi eq, %1, %43 : vector<8x128xi32>
    %45 = arith.ori %30, %44 : vector<8x128xi1>
    %cst_13 = arith.constant 0xFF800000 : f32
    %46 = vector.broadcast %cst_13 : f32 to vector<8x128xf32>
    %47 = arith.select %44, %46, %32 : vector<8x128xi1>, vector<8x128xf32>
    %cst_14 = arith.constant dense<0xFF800000> : vector<8xf32>
    %48 = vector.multi_reduction <maximumf>, %47, %cst_14 [1] : vector<8x128xf32> to vector<8xf32>
    %49 = vector.shape_cast %48 : vector<8xf32> to vector<8x1xf32>
    %50 = vector.broadcast %49 : vector<8x1xf32> to vector<8x128xf32>
    %51 = arith.cmpf oeq, %47, %50 : vector<8x128xf32>
    %cst_15 = arith.constant dense<true> : vector<8x128xi1>
    %52 = arith.xori %45, %cst_15 : vector<8x128xi1>
    %53 = arith.andi %51, %52 : vector<8x128xi1>
    %c128_i32_16 = arith.constant 128 : i32
    %54 = vector.broadcast %c128_i32_16 : i32 to vector<8x128xi32>
    %55 = arith.select %53, %1, %54 : vector<8x128xi1>, vector<8x128xi32>
    %cst_17 = arith.constant dense<2147483647> : vector<8xi32>
    %56 = vector.multi_reduction <minsi>, %55, %cst_17 [1] : vector<8x128xi32> to vector<8xi32>
    %57 = vector.shape_cast %56 : vector<8xi32> to vector<8x1xi32>
    %58 = vector.broadcast %57 : vector<8x1xi32> to vector<8x128xi32>
    %59 = arith.cmpi eq, %1, %58 : vector<8x128xi32>
    %60 = arith.ori %45, %59 : vector<8x128xi1>
    %cst_18 = arith.constant 0xFF800000 : f32
    %61 = vector.broadcast %cst_18 : f32 to vector<8x128xf32>
    %62 = arith.select %59, %61, %47 : vector<8x128xi1>, vector<8x128xf32>
    %cst_19 = arith.constant dense<0xFF800000> : vector<8xf32>
    %63 = vector.multi_reduction <maximumf>, %62, %cst_19 [1] : vector<8x128xf32> to vector<8xf32>
    %64 = vector.shape_cast %63 : vector<8xf32> to vector<8x1xf32>
    %65 = vector.broadcast %64 : vector<8x1xf32> to vector<8x128xf32>
    %66 = arith.cmpf oeq, %62, %65 : vector<8x128xf32>
    %cst_20 = arith.constant dense<true> : vector<8x128xi1>
    %67 = arith.xori %60, %cst_20 : vector<8x128xi1>
    %68 = arith.andi %66, %67 : vector<8x128xi1>
    %c128_i32_21 = arith.constant 128 : i32
    %69 = vector.broadcast %c128_i32_21 : i32 to vector<8x128xi32>
    %70 = arith.select %68, %1, %69 : vector<8x128xi1>, vector<8x128xi32>
    %cst_22 = arith.constant dense<2147483647> : vector<8xi32>
    %71 = vector.multi_reduction <minsi>, %70, %cst_22 [1] : vector<8x128xi32> to vector<8xi32>
    %72 = vector.shape_cast %71 : vector<8xi32> to vector<8x1xi32>
    %73 = vector.broadcast %72 : vector<8x1xi32> to vector<8x128xi32>
    %74 = arith.cmpi eq, %1, %73 : vector<8x128xi32>
    %75 = arith.ori %60, %74 : vector<8x128xi1>
    %cst_23 = arith.constant 0xFF800000 : f32
    %76 = vector.broadcast %cst_23 : f32 to vector<8x128xf32>
    %77 = arith.select %74, %76, %62 : vector<8x128xi1>, vector<8x128xf32>
    %cst_24 = arith.constant dense<0xFF800000> : vector<8xf32>
    %78 = vector.multi_reduction <maximumf>, %77, %cst_24 [1] : vector<8x128xf32> to vector<8xf32>
    %79 = vector.shape_cast %78 : vector<8xf32> to vector<8x1xf32>
    %80 = vector.broadcast %79 : vector<8x1xf32> to vector<8x128xf32>
    %81 = arith.cmpf oeq, %77, %80 : vector<8x128xf32>
    %cst_25 = arith.constant dense<true> : vector<8x128xi1>
    %82 = arith.xori %75, %cst_25 : vector<8x128xi1>
    %83 = arith.andi %81, %82 : vector<8x128xi1>
    %c128_i32_26 = arith.constant 128 : i32
    %84 = vector.broadcast %c128_i32_26 : i32 to vector<8x128xi32>
    %85 = arith.select %83, %1, %84 : vector<8x128xi1>, vector<8x128xi32>
    %cst_27 = arith.constant dense<2147483647> : vector<8xi32>
    %86 = vector.multi_reduction <minsi>, %85, %cst_27 [1] : vector<8x128xi32> to vector<8xi32>
    %87 = vector.shape_cast %86 : vector<8xi32> to vector<8x1xi32>
    %88 = vector.broadcast %87 : vector<8x1xi32> to vector<8x128xi32>
    %89 = arith.cmpi eq, %1, %88 : vector<8x128xi32>
    %90 = arith.ori %75, %89 : vector<8x128xi1>
    %cst_28 = arith.constant 0xFF800000 : f32
    %91 = vector.broadcast %cst_28 : f32 to vector<8x128xf32>
    %92 = arith.select %89, %91, %77 : vector<8x128xi1>, vector<8x128xf32>
    %cst_29 = arith.constant dense<0xFF800000> : vector<8xf32>
    %93 = vector.multi_reduction <maximumf>, %92, %cst_29 [1] : vector<8x128xf32> to vector<8xf32>
    %94 = vector.shape_cast %93 : vector<8xf32> to vector<8x1xf32>
    %95 = vector.broadcast %94 : vector<8x1xf32> to vector<8x128xf32>
    %96 = arith.cmpf oeq, %92, %95 : vector<8x128xf32>
    %cst_30 = arith.constant dense<true> : vector<8x128xi1>
    %97 = arith.xori %90, %cst_30 : vector<8x128xi1>
    %98 = arith.andi %96, %97 : vector<8x128xi1>
    %c128_i32_31 = arith.constant 128 : i32
    %99 = vector.broadcast %c128_i32_31 : i32 to vector<8x128xi32>
    %100 = arith.select %98, %1, %99 : vector<8x128xi1>, vector<8x128xi32>
    %cst_32 = arith.constant dense<2147483647> : vector<8xi32>
    %101 = vector.multi_reduction <minsi>, %100, %cst_32 [1] : vector<8x128xi32> to vector<8xi32>
    %102 = vector.shape_cast %101 : vector<8xi32> to vector<8x1xi32>
    %103 = vector.broadcast %102 : vector<8x1xi32> to vector<8x128xi32>
    %104 = arith.cmpi eq, %1, %103 : vector<8x128xi32>
    %105 = arith.ori %90, %104 : vector<8x128xi1>
    %cst_33 = arith.constant 0xFF800000 : f32
    %106 = vector.broadcast %cst_33 : f32 to vector<8x128xf32>
    %107 = arith.select %104, %106, %92 : vector<8x128xi1>, vector<8x128xf32>
    %cst_34 = arith.constant dense<0xFF800000> : vector<8xf32>
    %108 = vector.multi_reduction <maximumf>, %107, %cst_34 [1] : vector<8x128xf32> to vector<8xf32>
    %109 = vector.shape_cast %108 : vector<8xf32> to vector<8x1xf32>
    %110 = vector.broadcast %109 : vector<8x1xf32> to vector<8x128xf32>
    %111 = arith.cmpf oeq, %107, %110 : vector<8x128xf32>
    %cst_35 = arith.constant dense<true> : vector<8x128xi1>
    %112 = arith.xori %105, %cst_35 : vector<8x128xi1>
    %113 = arith.andi %111, %112 : vector<8x128xi1>
    %c128_i32_36 = arith.constant 128 : i32
    %114 = vector.broadcast %c128_i32_36 : i32 to vector<8x128xi32>
    %115 = arith.select %113, %1, %114 : vector<8x128xi1>, vector<8x128xi32>
    %cst_37 = arith.constant dense<2147483647> : vector<8xi32>
    %116 = vector.multi_reduction <minsi>, %115, %cst_37 [1] : vector<8x128xi32> to vector<8xi32>
    %117 = vector.shape_cast %116 : vector<8xi32> to vector<8x1xi32>
    %118 = vector.broadcast %117 : vector<8x1xi32> to vector<8x128xi32>
    %119 = arith.cmpi eq, %1, %118 : vector<8x128xi32>
    %120 = arith.ori %105, %119 : vector<8x128xi1>
    %cst_38 = arith.constant 0xFF800000 : f32
    %121 = vector.broadcast %cst_38 : f32 to vector<8x128xf32>
    %122 = arith.select %119, %121, %107 : vector<8x128xi1>, vector<8x128xf32>
    %cst_39 = arith.constant dense<0xFF800000> : vector<8xf32>
    %123 = vector.multi_reduction <maximumf>, %122, %cst_39 [1] : vector<8x128xf32> to vector<8xf32>
    %124 = vector.shape_cast %123 : vector<8xf32> to vector<8x1xf32>
    %125 = vector.broadcast %124 : vector<8x1xf32> to vector<8x128xf32>
    %126 = arith.cmpf oeq, %122, %125 : vector<8x128xf32>
    %cst_40 = arith.constant dense<true> : vector<8x128xi1>
    %127 = arith.xori %120, %cst_40 : vector<8x128xi1>
    %128 = arith.andi %126, %127 : vector<8x128xi1>
    %c128_i32_41 = arith.constant 128 : i32
    %129 = vector.broadcast %c128_i32_41 : i32 to vector<8x128xi32>
    %130 = arith.select %128, %1, %129 : vector<8x128xi1>, vector<8x128xi32>
    %cst_42 = arith.constant dense<2147483647> : vector<8xi32>
    %131 = vector.multi_reduction <minsi>, %130, %cst_42 [1] : vector<8x128xi32> to vector<8xi32>
    %132 = vector.shape_cast %131 : vector<8xi32> to vector<8x1xi32>
    %133 = vector.broadcast %132 : vector<8x1xi32> to vector<8x128xi32>
    %134 = arith.cmpi eq, %1, %133 : vector<8x128xi32>
    %135 = arith.ori %120, %134 : vector<8x128xi1>
    %cst_43 = arith.constant 0xFF800000 : f32
    %136 = vector.broadcast %cst_43 : f32 to vector<8x128xf32>
    %137 = arith.select %134, %136, %122 : vector<8x128xi1>, vector<8x128xf32>
    %cst_44 = arith.constant dense<0xFF800000> : vector<8xf32>
    %138 = vector.multi_reduction <maximumf>, %137, %cst_44 [1] : vector<8x128xf32> to vector<8xf32>
    %139 = vector.shape_cast %138 : vector<8xf32> to vector<8x1xf32>
    %140 = vector.broadcast %139 : vector<8x1xf32> to vector<8x128xf32>
    %141 = arith.cmpf oeq, %137, %140 : vector<8x128xf32>
    %cst_45 = arith.constant dense<true> : vector<8x128xi1>
    %142 = arith.xori %135, %cst_45 : vector<8x128xi1>
    %143 = arith.andi %141, %142 : vector<8x128xi1>
    %c128_i32_46 = arith.constant 128 : i32
    %144 = vector.broadcast %c128_i32_46 : i32 to vector<8x128xi32>
    %145 = arith.select %143, %1, %144 : vector<8x128xi1>, vector<8x128xi32>
    %cst_47 = arith.constant dense<2147483647> : vector<8xi32>
    %146 = vector.multi_reduction <minsi>, %145, %cst_47 [1] : vector<8x128xi32> to vector<8xi32>
    %147 = vector.shape_cast %146 : vector<8xi32> to vector<8x1xi32>
    %148 = vector.broadcast %147 : vector<8x1xi32> to vector<8x128xi32>
    %149 = arith.cmpi eq, %1, %148 : vector<8x128xi32>
    %150 = arith.ori %135, %149 : vector<8x128xi1>
    %cst_48 = arith.constant 0xFF800000 : f32
    %151 = vector.broadcast %cst_48 : f32 to vector<8x128xf32>
    %152 = arith.select %149, %151, %137 : vector<8x128xi1>, vector<8x128xf32>
    %cst_49 = arith.constant dense<0xFF800000> : vector<8xf32>
    %153 = vector.multi_reduction <maximumf>, %152, %cst_49 [1] : vector<8x128xf32> to vector<8xf32>
    %154 = vector.shape_cast %153 : vector<8xf32> to vector<8x1xf32>
    %155 = vector.broadcast %154 : vector<8x1xf32> to vector<8x128xf32>
    %156 = arith.cmpf oeq, %152, %155 : vector<8x128xf32>
    %cst_50 = arith.constant dense<true> : vector<8x128xi1>
    %157 = arith.xori %150, %cst_50 : vector<8x128xi1>
    %158 = arith.andi %156, %157 : vector<8x128xi1>
    %c128_i32_51 = arith.constant 128 : i32
    %159 = vector.broadcast %c128_i32_51 : i32 to vector<8x128xi32>
    %160 = arith.select %158, %1, %159 : vector<8x128xi1>, vector<8x128xi32>
    %cst_52 = arith.constant dense<2147483647> : vector<8xi32>
    %161 = vector.multi_reduction <minsi>, %160, %cst_52 [1] : vector<8x128xi32> to vector<8xi32>
    %162 = vector.shape_cast %161 : vector<8xi32> to vector<8x1xi32>
    %163 = vector.broadcast %162 : vector<8x1xi32> to vector<8x128xi32>
    %164 = arith.cmpi eq, %1, %163 : vector<8x128xi32>
    %165 = arith.ori %150, %164 : vector<8x128xi1>
    %cst_53 = arith.constant 0xFF800000 : f32
    %166 = vector.broadcast %cst_53 : f32 to vector<8x128xf32>
    %167 = arith.select %164, %166, %152 : vector<8x128xi1>, vector<8x128xf32>
    %cst_54 = arith.constant dense<0xFF800000> : vector<8xf32>
    %168 = vector.multi_reduction <maximumf>, %167, %cst_54 [1] : vector<8x128xf32> to vector<8xf32>
    %169 = vector.shape_cast %168 : vector<8xf32> to vector<8x1xf32>
    %170 = vector.broadcast %169 : vector<8x1xf32> to vector<8x128xf32>
    %171 = arith.cmpf oeq, %167, %170 : vector<8x128xf32>
    %cst_55 = arith.constant dense<true> : vector<8x128xi1>
    %172 = arith.xori %165, %cst_55 : vector<8x128xi1>
    %173 = arith.andi %171, %172 : vector<8x128xi1>
    %c128_i32_56 = arith.constant 128 : i32
    %174 = vector.broadcast %c128_i32_56 : i32 to vector<8x128xi32>
    %175 = arith.select %173, %1, %174 : vector<8x128xi1>, vector<8x128xi32>
    %cst_57 = arith.constant dense<2147483647> : vector<8xi32>
    %176 = vector.multi_reduction <minsi>, %175, %cst_57 [1] : vector<8x128xi32> to vector<8xi32>
    %177 = vector.shape_cast %176 : vector<8xi32> to vector<8x1xi32>
    %178 = vector.broadcast %177 : vector<8x1xi32> to vector<8x128xi32>
    %179 = arith.cmpi eq, %1, %178 : vector<8x128xi32>
    %180 = arith.ori %165, %179 : vector<8x128xi1>
    %cst_58 = arith.constant 0xFF800000 : f32
    %181 = vector.broadcast %cst_58 : f32 to vector<8x128xf32>
    %182 = arith.select %179, %181, %167 : vector<8x128xi1>, vector<8x128xf32>
    %cst_59 = arith.constant dense<0xFF800000> : vector<8xf32>
    %183 = vector.multi_reduction <maximumf>, %182, %cst_59 [1] : vector<8x128xf32> to vector<8xf32>
    %184 = vector.shape_cast %183 : vector<8xf32> to vector<8x1xf32>
    %185 = vector.broadcast %184 : vector<8x1xf32> to vector<8x128xf32>
    %186 = arith.cmpf oeq, %182, %185 : vector<8x128xf32>
    %cst_60 = arith.constant dense<true> : vector<8x128xi1>
    %187 = arith.xori %180, %cst_60 : vector<8x128xi1>
    %188 = arith.andi %186, %187 : vector<8x128xi1>
    %c128_i32_61 = arith.constant 128 : i32
    %189 = vector.broadcast %c128_i32_61 : i32 to vector<8x128xi32>
    %190 = arith.select %188, %1, %189 : vector<8x128xi1>, vector<8x128xi32>
    %cst_62 = arith.constant dense<2147483647> : vector<8xi32>
    %191 = vector.multi_reduction <minsi>, %190, %cst_62 [1] : vector<8x128xi32> to vector<8xi32>
    %192 = vector.shape_cast %191 : vector<8xi32> to vector<8x1xi32>
    %193 = vector.broadcast %192 : vector<8x1xi32> to vector<8x128xi32>
    %194 = arith.cmpi eq, %1, %193 : vector<8x128xi32>
    %195 = arith.ori %180, %194 : vector<8x128xi1>
    %cst_63 = arith.constant 0.000000e+00 : f32
    %196 = vector.broadcast %cst_63 : f32 to vector<8x128xf32>
    %197 = arith.cmpf one, %0, %196 : vector<8x128xf32>
    %198 = arith.andi %195, %197 : vector<8x128xi1>
    %cst_64 = arith.constant 0xFF800000 : f32
    %199 = vector.broadcast %cst_64 : f32 to vector<8x128xf32>
    %200 = arith.select %198, %0, %199 : vector<8x128xi1>, vector<8x128xf32>
    %c0_65 = arith.constant 0 : index
    %c0_66 = arith.constant 0 : index
    %201 = vector.load %arg2[%c0_65, %c0_66] : memref<8x128xf32, #tpu.memory_space<vmem>>, vector<8x128xf32>
    tpu.vector_store %arg2[%c0_65, %c0_66], %200 {strides = array<i32>} : memref<8x128xf32, #tpu.memory_space<vmem>>, vector<8x128xf32>,
    return
  }
  func.func @transform_0(%arg0: i32) -> (i32, i32) {
    %c0_i32 = arith.constant 0 : i32
    %c0_i32_0 = arith.constant 0 : i32
    return %arg0, %c0_i32 : i32, i32
  }
  func.func @transform_1(%arg0: i32) -> (i32, i32) {
    %c0_i32 = arith.constant 0 : i32
    %c0_i32_0 = arith.constant 0 : i32
    return %arg0, %c0_i32 : i32, i32
  }
}

</mosaic_0001>

<llo_original>
// kernel: tpu_custom_call.1
$region0: #{tpu_custom_call.1}
  #allocation0 [shape = 'u32[]', space=smem, size = 0x4, offset = 0x4, fixed_abs, tag = 'smem constant byte address 0x4 - core index']
  #allocation1 [shape = 'u32[144,128]{1,0:T(1,128)}', space=vmem, size = 0x12000, scoped, tag = 'internal scratch']
  %s0 = inlined_call_operand.hbm [shape: f32[8,128], index: 0, kind: input, shape index: {}]
  %s1 = inlined_call_operand.hbm [shape: f32[8,128], index: 1, kind: output, shape index: {}]
  %s2 = sld [smem:[#allocation0]]
  $region18: #{tpu_custom_call.1} parent=0
    _
  %s4 = ssub.s32 1, %s2
  %s5 = scalar_select 0, %s4, %s2
  $region1: #{tpu_custom_call.1} parent=0
    #allocation2 [shape = 'u8[4096]{0}', space=vmem, size = 0x1000, scoped, tag = 'input window, operand 0, single buffered']
    #allocation3 [shape = 's32[1]{0}', space=sflag, size = 0x4, scoped, tag = 'scoped memory for tpu_custom_call.1']
    #allocation4 [shape = 's32[1]{0}', space=sflag, size = 0x4, scoped, tag = 'scoped memory for tpu_custom_call.1']
    #allocation5 [shape = 'u8[4096]{0}', space=vmem, size = 0x1000, scoped, tag = 'output window, operand 0, single buffered']
    %6 = vsyncpa [#allocation3], 0
    %7 = vsyncpa [#allocation4], 0
    // Predicated region
    $region2: #{tpu_custom_call.1} parent=1 // pred_check
      _
    $region3: #{tpu_custom_call.1} parent=1 // pred_check_branch
      %9 = sbr.rel (0) target = $region5
    $region4: #{tpu_custom_call.1} parent=1 // pred_region
      %s11 = ssub.s32 128, 128
      %12 = vsyncadd [#allocation3], %s11
      %s14 = sshll.u32 [#allocation2], 4
      %s15 = int_to_ptr.vmem [resolvable:$true] %s14
      %17 = dma.hbm_to_vmem [thread:$0]  %s0, 128, %s15, [#allocation3]
    $region5: #{tpu_custom_call.1} parent=1 // pred_fallthru
      _
    // Predicated region
    $region6: #{tpu_custom_call.1} parent=1 // pred_check
      _
    $region7: #{tpu_custom_call.1} parent=1 // pred_check_branch
      %19 = sbr.rel (0) target = $region9
    $region8: #{tpu_custom_call.1} parent=1 // pred_region
      %20 = dma.done [#allocation3], 128
    $region9: #{tpu_custom_call.1} parent=1 // pred_fallthru
      _
    %v21 = vld [vmem:[#allocation2] sm:$0xff]
    %v22 = vlaneseq
    %v23 = vand.u32 %v22, 127
    %24 = vmax.xlane.f32.xlu0 %v21
    %v25 = vpop.xlane.xlu0 %24
    %vm26 = vcmp.eq.f32.partialorder %v21, %v25
    %v27 = vsel %vm26, %v23, 128
    %v28 = vand.u32 %v27, 65535
    %v29 = vshra.s32 %v27, 16
    %v30 = vcvt.s32.f32 %v28
    %v31 = vcvt.s32.f32 %v29
    %32 = vmin.xlane.f32.xlu0 %v31
    %v33 = vpop.xlane.xlu0 %32
    %vm34 = vcmp.eq.f32.partialorder %v31, %v33
    %v35 = vsel %vm34, %v30, inf
    %36 = vmin.xlane.f32.xlu0 %v35
    %v37 = vpop.xlane.xlu0 %36
    %v38 = vcvt.f32.s32 %v37
    %v39 = vcvt.f32.s32 %v33
    %v40 = vshll.u32 %v39, 16
    %v41 = vadd.s32 %v40, %v38
    %vm42 = vcmp.eq.s32.totalorder %v23, %v41
    %v43 = vsel %vm42, -inf, %v21
    %44 = vmax.xlane.f32.xlu0 %v43
    %v45 = vpop.xlane.xlu0 %44
    %vm46 = vcmp.eq.f32.partialorder %v43, %v45
    %vm47 = vmxor %vm42, 1
    %vm48 = vmand %vm46, %vm47
    %v49 = vsel %vm48, %v23, 128
    %v50 = vand.u32 %v49, 65535
    %v51 = vshra.s32 %v49, 16
    %v52 = vcvt.s32.f32 %v50
    %v53 = vcvt.s32.f32 %v51
    %54 = vmin.xlane.f32.xlu0 %v53
    %v55 = vpop.xlane.xlu0 %54
    %vm56 = vcmp.eq.f32.partialorder %v53, %v55
    %v57 = vsel %vm56, %v52, inf
    %58 = vmin.xlane.f32.xlu0 %v57
    %v59 = vpop.xlane.xlu0 %58
    %v60 = vcvt.f32.s32 %v59
    %v61 = vcvt.f32.s32 %v55
    %v62 = vshll.u32 %v61, 16
    %v63 = vadd.s32 %v62, %v60
    %vm64 = vcmp.eq.s32.totalorder %v23, %v63
    %vm65 = vmor %vm42, %vm64
    %v66 = vsel %vm64, -inf, %v43
    %67 = vmax.xlane.f32.xlu0 %v66
    %v68 = vpop.xlane.xlu0 %67
    %vm69 = vcmp.eq.f32.partialorder %v66, %v68
    %vm70 = vmxor %vm65, 1
    %vm71 = vmand %vm69, %vm70
    %v72 = vsel %vm71, %v23, 128
    %v73 = vand.u32 %v72, 65535
    %v74 = vshra.s32 %v72, 16
    %v75 = vcvt.s32.f32 %v73
    %v76 = vcvt.s32.f32 %v74
    %77 = vmin.xlane.f32.xlu0 %v76
    %v78 = vpop.xlane.xlu0 %77
    %vm79 = vcmp.eq.f32.partialorder %v76, %v78
    %v80 = vsel %vm79, %v75, inf
    %81 = vmin.xlane.f32.xlu0 %v80
    %v82 = vpop.xlane.xlu0 %81
    %v83 = vcvt.f32.s32 %v82
    %v84 = vcvt.f32.s32 %v78
    %v85 = vshll.u32 %v84, 16
    %v86 = vadd.s32 %v85, %v83
    %vm87 = vcmp.eq.s32.totalorder %v23, %v86
    %vm88 = vmor %vm65, %vm87
    %v89 = vsel %vm87, -inf, %v66
    %90 = vmax.xlane.f32.xlu0 %v89
    %v91 = vpop.xlane.xlu0 %90
    %vm92 = vcmp.eq.f32.partialorder %v89, %v91
    %vm93 = vmxor %vm88, 1
    %vm94 = vmand %vm92, %vm93
    %v95 = vsel %vm94, %v23, 128
    %v96 = vand.u32 %v95, 65535
    %v97 = vshra.s32 %v95, 16
    %v98 = vcvt.s32.f32 %v96
    %v99 = vcvt.s32.f32 %v97
    %100 = vmin.xlane.f32.xlu0 %v99
    %v101 = vpop.xlane.xlu0 %100
    %vm102 = vcmp.eq.f32.partialorder %v99, %v101
    %v103 = vsel %vm102, %v98, inf
    %104 = vmin.xlane.f32.xlu0 %v103
    %v105 = vpop.xlane.xlu0 %104
    %v106 = vcvt.f32.s32 %v105
    %v107 = vcvt.f32.s32 %v101
    %v108 = vshll.u32 %v107, 16
    %v109 = vadd.s32 %v108, %v106
    %vm110 = vcmp.eq.s32.totalorder %v23, %v109
    %vm111 = vmor %vm88, %vm110
    %v112 = vsel %vm110, -inf, %v89
    %113 = vmax.xlane.f32.xlu0 %v112
    %v114 = vpop.xlane.xlu0 %113
    %vm115 = vcmp.eq.f32.partialorder %v112, %v114
    %vm116 = vmxor %vm111, 1
    %vm117 = vmand %vm115, %vm116
    %v118 = vsel %vm117, %v23, 128
    %v119 = vand.u32 %v118, 65535
    %v120 = vshra.s32 %v118, 16
    %v121 = vcvt.s32.f32 %v119
    %v122 = vcvt.s32.f32 %v120
    %123 = vmin.xlane.f32.xlu0 %v122
    %v124 = vpop.xlane.xlu0 %123
    %vm125 = vcmp.eq.f32.partialorder %v122, %v124
    %v126 = vsel %vm125, %v121, inf
    %127 = vmin.xlane.f32.xlu0 %v126
    %v128 = vpop.xlane.xlu0 %127
    %v129 = vcvt.f32.s32 %v128
    %v130 = vcvt.f32.s32 %v124
    %v131 = vshll.u32 %v130, 16
    %v132 = vadd.s32 %v131, %v129
    %vm133 = vcmp.eq.s32.totalorder %v23, %v132
    %vm134 = vmor %vm111, %vm133
    %v135 = vsel %vm133, -inf, %v112
    %136 = vmax.xlane.f32.xlu0 %v135
    %v137 = vpop.xlane.xlu0 %136
    %vm138 = vcmp.eq.f32.partialorder %v135, %v137
    %vm139 = vmxor %vm134, 1
    %vm140 = vmand %vm138, %vm139
    %v141 = vsel %vm140, %v23, 128
    %v142 = vand.u32 %v141, 65535
    %v143 = vshra.s32 %v141, 16
    %v144 = vcvt.s32.f32 %v142
    %v145 = vcvt.s32.f32 %v143
    %146 = vmin.xlane.f32.xlu0 %v145
    %v147 = vpop.xlane.xlu0 %146
    %vm148 = vcmp.eq.f32.partialorder %v145, %v147
    %v149 = vsel %vm148, %v144, inf
    %150 = vmin.xlane.f32.xlu0 %v149
    %v151 = vpop.xlane.xlu0 %150
    %v152 = vcvt.f32.s32 %v151
    %v153 = vcvt.f32.s32 %v147
    %v154 = vshll.u32 %v153, 16
    %v155 = vadd.s32 %v154, %v152
    %vm156 = vcmp.eq.s32.totalorder %v23, %v155
    %vm157 = vmor %vm134, %vm156
    %v158 = vsel %vm156, -inf, %v135
    %159 = vmax.xlane.f32.xlu0 %v158
    %v160 = vpop.xlane.xlu0 %159
    %vm161 = vcmp.eq.f32.partialorder %v158, %v160
    %vm162 = vmxor %vm157, 1
    %vm163 = vmand %vm161, %vm162
    %v164 = vsel %vm163, %v23, 128
    %v165 = vand.u32 %v164, 65535
    %v166 = vshra.s32 %v164, 16
    %v167 = vcvt.s32.f32 %v165
    %v168 = vcvt.s32.f32 %v166
    %169 = vmin.xlane.f32.xlu0 %v168
    %v170 = vpop.xlane.xlu0 %169
    %vm171 = vcmp.eq.f32.partialorder %v168, %v170
    %v172 = vsel %vm171, %v167, inf
    %173 = vmin.xlane.f32.xlu0 %v172
    %v174 = vpop.xlane.xlu0 %173
    %v175 = vcvt.f32.s32 %v174
    %v176 = vcvt.f32.s32 %v170
    %v177 = vshll.u32 %v176, 16
    %v178 = vadd.s32 %v177, %v175
    %vm179 = vcmp.eq.s32.totalorder %v23, %v178
    %vm180 = vmor %vm157, %vm179
    %v181 = vsel %vm179, -inf, %v158
    %182 = vmax.xlane.f32.xlu0 %v181
    %v183 = vpop.xlane.xlu0 %182
    %vm184 = vcmp.eq.f32.partialorder %v181, %v183
    %vm185 = vmxor %vm180, 1
    %vm186 = vmand %vm184, %vm185
    %v187 = vsel %vm186, %v23, 128
    %v188 = vand.u32 %v187, 65535
    %v189 = vshra.s32 %v187, 16
    %v190 = vcvt.s32.f32 %v188
    %v191 = vcvt.s32.f32 %v189
    %192 = vmin.xlane.f32.xlu0 %v191
    %v193 = vpop.xlane.xlu0 %192
    %vm194 = vcmp.eq.f32.partialorder %v191, %v193
    %v195 = vsel %vm194, %v190, inf
    %196 = vmin.xlane.f32.xlu0 %v195
    %v197 = vpop.xlane.xlu0 %196
    %v198 = vcvt.f32.s32 %v197
    %v199 = vcvt.f32.s32 %v193
    %v200 = vshll.u32 %v199, 16
    %v201 = vadd.s32 %v200, %v198
    %vm202 = vcmp.eq.s32.totalorder %v23, %v201
    %vm203 = vmor %vm180, %vm202
    %v204 = vsel %vm202, -inf, %v181
    %205 = vmax.xlane.f32.xlu0 %v204
    %v206 = vpop.xlane.xlu0 %205
    %vm207 = vcmp.eq.f32.partialorder %v204, %v206
    %vm208 = vmxor %vm203, 1
    %vm209 = vmand %vm207, %vm208
    %v210 = vsel %vm209, %v23, 128
    %v211 = vand.u32 %v210, 65535
    %v212 = vshra.s32 %v210, 16
    %v213 = vcvt.s32.f32 %v211
    %v214 = vcvt.s32.f32 %v212
    %215 = vmin.xlane.f32.xlu0 %v214
    %v216 = vpop.xlane.xlu0 %215
    %vm217 = vcmp.eq.f32.partialorder %v214, %v216
    %v218 = vsel %vm217, %v213, inf
    %219 = vmin.xlane.f32.xlu0 %v218
    %v220 = vpop.xlane.xlu0 %219
    %v221 = vcvt.f32.s32 %v220
    %v222 = vcvt.f32.s32 %v216
    %v223 = vshll.u32 %v222, 16
    %v224 = vadd.s32 %v223, %v221
    %vm225 = vcmp.eq.s32.totalorder %v23, %v224
    %vm226 = vmor %vm203, %vm225
    %v227 = vsel %vm225, -inf, %v204
    %228 = vmax.xlane.f32.xlu0 %v227
    %v229 = vpop.xlane.xlu0 %228
    %vm230 = vcmp.eq.f32.partialorder %v227, %v229
    %vm231 = vmxor %vm226, 1
    %vm232 = vmand %vm230, %vm231
    %v233 = vsel %vm232, %v23, 128
    %v234 = vand.u32 %v233, 65535
    %v235 = vshra.s32 %v233, 16
    %v236 = vcvt.s32.f32 %v234
    %v237 = vcvt.s32.f32 %v235
    %238 = vmin.xlane.f32.xlu0 %v237
    %v239 = vpop.xlane.xlu0 %238
    %vm240 = vcmp.eq.f32.partialorder %v237, %v239
    %v241 = vsel %vm240, %v236, inf
    %242 = vmin.xlane.f32.xlu0 %v241
    %v243 = vpop.xlane.xlu0 %242
    %v244 = vcvt.f32.s32 %v243
    %v245 = vcvt.f32.s32 %v239
    %v246 = vshll.u32 %v245, 16
    %v247 = vadd.s32 %v246, %v244
    %vm248 = vcmp.eq.s32.totalorder %v23, %v247
    %vm249 = vmor %vm226, %vm248
    %v250 = vsel %vm248, -inf, %v227
    %251 = vmax.xlane.f32.xlu0 %v250
    %v252 = vpop.xlane.xlu0 %251
    %vm253 = vcmp.eq.f32.partialorder %v250, %v252
    %vm254 = vmxor %vm249, 1
    %vm255 = vmand %vm253, %vm254
    %v256 = vsel %vm255, %v23, 128
    %v257 = vand.u32 %v256, 65535
    %v258 = vshra.s32 %v256, 16
    %v259 = vcvt.s32.f32 %v257
    %v260 = vcvt.s32.f32 %v258
    %261 = vmin.xlane.f32.xlu0 %v260
    %v262 = vpop.xlane.xlu0 %261
    %vm263 = vcmp.eq.f32.partialorder %v260, %v262
    %v264 = vsel %vm263, %v259, inf
    %265 = vmin.xlane.f32.xlu0 %v264
    %v266 = vpop.xlane.xlu0 %265
    %v267 = vcvt.f32.s32 %v266
    %v268 = vcvt.f32.s32 %v262
    %v269 = vshll.u32 %v268, 16
    %v270 = vadd.s32 %v269, %v267
    %vm271 = vcmp.eq.s32.totalorder %v23, %v270
    %vm272 = vmor %vm249, %vm271
    %v273 = vsel %vm271, -inf, %v250
    %274 = vmax.xlane.f32.xlu0 %v273
    %v275 = vpop.xlane.xlu0 %274
    %vm276 = vcmp.eq.f32.partialorder %v273, %v275
    %vm277 = vmxor %vm272, 1
    %vm278 = vmand %vm276, %vm277
    %v279 = vsel %vm278, %v23, 128
    %v280 = vand.u32 %v279, 65535
    %v281 = vshra.s32 %v279, 16
    %v282 = vcvt.s32.f32 %v280
    %v283 = vcvt.s32.f32 %v281
    %284 = vmin.xlane.f32.xlu0 %v283
    %v285 = vpop.xlane.xlu0 %284
    %vm286 = vcmp.eq.f32.partialorder %v283, %v285
    %v287 = vsel %vm286, %v282, inf
    %288 = vmin.xlane.f32.xlu0 %v287
    %v289 = vpop.xlane.xlu0 %288
    %v290 = vcvt.f32.s32 %v289
    %v291 = vcvt.f32.s32 %v285
    %v292 = vshll.u32 %v291, 16
    %v293 = vadd.s32 %v292, %v290
    %vm294 = vcmp.eq.s32.totalorder %v23, %v293
    %vm295 = vmor %vm272, %vm294
    %v296 = vsel %vm294, -inf, %v273
    %297 = vmax.xlane.f32.xlu0 %v296
    %v298 = vpop.xlane.xlu0 %297
    %vm299 = vcmp.eq.f32.partialorder %v296, %v298
    %vm300 = vmxor %vm295, 1
    %vm301 = vmand %vm299, %vm300
    %v302 = vsel %vm301, %v23, 128
    %v303 = vand.u32 %v302, 65535
    %v304 = vshra.s32 %v302, 16
    %v305 = vcvt.s32.f32 %v303
    %v306 = vcvt.s32.f32 %v304
    %307 = vmin.xlane.f32.xlu0 %v306
    %v308 = vpop.xlane.xlu0 %307
    %vm309 = vcmp.eq.f32.partialorder %v306, %v308
    %v310 = vsel %vm309, %v305, inf
    %311 = vmin.xlane.f32.xlu0 %v310
    %v312 = vpop.xlane.xlu0 %311
    %v313 = vcvt.f32.s32 %v312
    %v314 = vcvt.f32.s32 %v308
    %v315 = vshll.u32 %v314, 16
    %v316 = vadd.s32 %v315, %v313
    %vm317 = vcmp.eq.s32.totalorder %v23, %v316
    %vm318 = vmor %vm295, %vm317
    %vm319 = vcmp.ne.f32.partialorder %v21, 0.0
    %vm320 = vmand %vm318, %vm319
    %v321 = vsel %vm320, %v21, -inf
    %322 = vst [vmem:[#allocation5] sm:$0xff] %v321
    // Predicated region
    $region10: #{tpu_custom_call.1} parent=1 // pred_check
      _
    $region11: #{tpu_custom_call.1} parent=1 // pred_check_branch
      %324 = sbr.rel (0) target = $region13
    $region12: #{tpu_custom_call.1} parent=1 // pred_region
      %s326 = ssub.s32 128, 128
      %327 = vsyncadd [#allocation4], %s326
      %s329 = sshll.u32 [#allocation5], 4
      %s330 = int_to_ptr.vmem [resolvable:$true] %s329
      %332 = dma.vmem_to_hbm [thread:$0]  %s330, 128, %s1, [#allocation4]
    $region13: #{tpu_custom_call.1} parent=1 // pred_fallthru
      _
    // Predicated region
    $region14: #{tpu_custom_call.1} parent=1 // pred_check
      _
    $region15: #{tpu_custom_call.1} parent=1 // pred_check_branch
      %334 = sbr.rel (0) target = $region17
    $region16: #{tpu_custom_call.1} parent=1 // pred_region
      %335 = dma.done [#allocation4], 128
    $region17: #{tpu_custom_call.1} parent=1 // pred_fallthru
      _
    %336 = vsyncpa [#allocation3], 1
    %337 = vsyncpa [#allocation4], 1

</llo_original>
